<compile_context>
chip_gen: v7x
topology: tpu7x:2x2x1
jax: 0.10.0
libtpu: 0.0.40
codegen_flags: <defaults>
</compile_context>

<pallas_src>
import jax
import jax.numpy as jnp
from jax.experimental import pallas as pl
from jax.experimental.pallas import tpu as pltpu


def _vae_kernel(
    x_ref, eps_ref,
    w1_ref, b1_ref,            # encoder linear 1: input_dim -> hidden_dim
    w2_ref, b2_ref,            # encoder linear 2: hidden_dim -> hidden_dim//2
    wmuv_ref, bmuv_ref,        # fused fc_mu|fc_log_var: hidden//2 -> 2*latent
    wd1_ref, bd1_ref,          # decoder linear 1: latent_dim -> hidden_dim//2
    wd2_ref, bd2_ref,          # decoder linear 2: hidden_dim//2 -> hidden_dim
    wd3_ref, bd3_ref,          # decoder linear 3: hidden_dim -> input_dim
    recon_ref, muv_ref,        # outputs: [TB, input_dim], [TB, 2*latent]
):
    cd = w1_ref.dtype          # matmul operand dtype (f32 or bf16)
    f32 = jnp.float32
    latent = eps_ref.shape[-1]

    x = x_ref[...]
    eps = eps_ref[...]

    # ---- encoder ----
    h = jnp.dot(x.astype(cd), w1_ref[...], preferred_element_type=f32) + b1_ref[...]
    h = jnp.maximum(h, 0.0)
    h = jnp.dot(h.astype(cd), w2_ref[...], preferred_element_type=f32) + b2_ref[...]
    h = jnp.maximum(h, 0.0)

    # ---- fused latent heads: one matmul, split mu / log_var ----
    muv = jnp.dot(h.astype(cd), wmuv_ref[...], preferred_element_type=f32) + bmuv_ref[...]
    mu = muv[:, :latent]
    log_var = muv[:, latent:]

    # ---- reparameterize: z = mu + eps * exp(0.5 * log_var) ----
    z = mu + eps * jnp.exp(0.5 * log_var)

    # ---- decoder ----
    d = jnp.dot(z.astype(cd), wd1_ref[...], preferred_element_type=f32) + bd1_ref[...]
    d = jnp.maximum(d, 0.0)
    d = jnp.dot(d.astype(cd), wd2_ref[...], preferred_element_type=f32) + bd2_ref[...]
    d = jnp.maximum(d, 0.0)
    d = jnp.dot(d.astype(cd), wd3_ref[...], preferred_element_type=f32) + bd3_ref[...]
    recon = jax.nn.sigmoid(d)

    recon_ref[...] = recon.astype(recon_ref.dtype)
    muv_ref[...] = muv.astype(muv_ref.dtype)


def vae_forward(x, eps, params, *, matmul_dtype=jnp.float32, batch_tile=256):
    """Full VAE forward in one Pallas call (batch-tiled grid).

    x:           [B, input_dim] float32
    eps:         [B, latent_dim] float32 (standard normal noise, replaces
                 torch.randn_like so the kernel stays deterministic)
    params:      dict of (W, b) pairs, W already [in, out], b [1, out], f32.
    matmul_dtype: dtype of MXU operands (jnp.bfloat16 on v6e/v7x for ~2x MXU
                 throughput; accumulation is always f32).
    batch_tile:  batch rows per grid step (256 fills v6e/v7x MXU rows; use
                 128 on v5e).
    Returns (reconstruction, mu, log_var).
    """
    B, input_dim = x.shape
    latent_dim = eps.shape[1]
    hidden_dim = params["w1"].shape[1]
    half = hidden_dim // 2

    # Fused latent-head weight/bias (fc_mu | fc_log_var side by side).
    wmuv = jnp.concatenate([params["wmu"], params["wlv"]], axis=1)
    bmuv = jnp.concatenate([params["bmu"], params["blv"]], axis=1)

    md = matmul_dtype
    weights = (
        params["w1"].astype(md), params["b1"],
        params["w2"].astype(md), params["b2"],
        wmuv.astype(md), bmuv,
        params["wd1"].astype(md), params["bd1"],
        params["wd2"].astype(md), params["bd2"],
        params["wd3"].astype(md), params["bd3"],
    )

    # ---- batch tiling (pad B up to a multiple of the tile) ----
    if B <= batch_tile:
        TB, Bp = B, B                      # single block == full batch
    else:
        TB = max(8, (batch_tile // 8) * 8)  # keep sublane-aligned
        Bp = TB * ((B + TB - 1) // TB)
    if Bp != B:
        pad = Bp - B
        x = jnp.concatenate([x, jnp.zeros((pad, input_dim), x.dtype)], axis=0)
        eps = jnp.concatenate([eps, jnp.zeros((pad, latent_dim), eps.dtype)], axis=0)

    grid = (Bp // TB,)
    batch_map = lambda i: (i, 0)           # activations: stream over batch
    const_map = lambda i: (0, 0)           # weights: VMEM-resident every step

    in_specs = [
        pl.BlockSpec((TB, input_dim), batch_map),
        pl.BlockSpec((TB, latent_dim), batch_map),
    ] + [pl.BlockSpec(w.shape, const_map) for w in weights]

    out_specs = (
        pl.BlockSpec((TB, input_dim), batch_map),
        pl.BlockSpec((TB, 2 * latent_dim), batch_map),
    )
    out_shape = (
        jax.ShapeDtypeStruct((Bp, input_dim), jnp.float32),       # reconstruction
        jax.ShapeDtypeStruct((Bp, 2 * latent_dim), jnp.float32),  # mu | log_var
    )

    # Advisory cost estimate so XLA does not over-serialize around this call.
    flops = 2 * Bp * (
        input_dim * hidden_dim + hidden_dim * half + half * 2 * latent_dim
        + latent_dim * half + half * hidden_dim + hidden_dim * input_dim
    )
    transcendentals = Bp * (latent_dim + input_dim)  # exp (reparam) + sigmoid
    bytes_accessed = int(
        x.size * x.dtype.itemsize
        + eps.size * eps.dtype.itemsize
        + sum(int(w.size) * w.dtype.itemsize for w in weights)
        + Bp * input_dim * 4 + Bp * 2 * latent_dim * 4
    )

    recon_p, muv_p = pl.pallas_call(
        _vae_kernel,
        grid=grid,
        in_specs=in_specs,
        out_specs=out_specs,
        out_shape=out_shape,
        compiler_params=pltpu.CompilerParams(
            dimension_semantics=("parallel",)),
        cost_estimate=pl.CostEstimate(
            flops=flops,
            transcendentals=transcendentals,
            bytes_accessed=bytes_accessed),
    )(x, eps, *weights)

    recon = recon_p[:B]
    mu = muv_p[:B, :latent_dim]
    log_var = muv_p[:B, latent_dim:]
    return recon, mu, log_var


def init_params(key, input_dim, hidden_dim, latent_dim):
    """Deterministic synthetic parameters (shapes match the PyTorch module)."""
    half = hidden_dim // 2
    layer_dims = {
        "1": (input_dim, hidden_dim),
        "2": (hidden_dim, half),
        "mu": (half, latent_dim),
        "lv": (half, latent_dim),
        "d1": (latent_dim, half),
        "d2": (half, hidden_dim),
        "d3": (hidden_dim, input_dim),
    }
    params = {}
    for name, (fan_in, fan_out) in layer_dims.items():
        key, kw, kb = jax.random.split(key, 3)
        scale = 1.0 / jnp.sqrt(jnp.float32(fan_in))
        params["w" + name] = (
            jax.random.uniform(kw, (fan_in, fan_out), jnp.float32, -1.0, 1.0) * scale
        )
        params["b" + name] = (
            jax.random.uniform(kb, (1, fan_out), jnp.float32, -1.0, 1.0) * scale
        )
    return params


def vae_forward_ref(x, eps, p):
    """Plain-JAX reference for numeric sanity checking."""
    h = jax.nn.relu(x @ p["w1"] + p["b1"])
    h = jax.nn.relu(h @ p["w2"] + p["b2"])
    mu = h @ p["wmu"] + p["bmu"]
    log_var = h @ p["wlv"] + p["blv"]
    z = mu + eps * jnp.exp(0.5 * log_var)
    d = jax.nn.relu(z @ p["wd1"] + p["bd1"])
    d = jax.nn.relu(d @ p["wd2"] + p["bd2"])
    recon = jax.nn.sigmoid(d @ p["wd3"] + p["bd3"])
    return recon, mu, log_var


if __name__ == "__main__":
    # Small shapes consistent with the module's forward.
    batch = 8
    input_dim = 128
    hidden_dim = 64
    latent_dim = 16

    key = jax.random.PRNGKey(0)
    k_params, k_x, k_eps, k_x2, k_eps2 = jax.random.split(key, 5)

    params = init_params(k_params, input_dim, hidden_dim, latent_dim)

    # TODO(synk): eps (torch.randn_like) is generated outside the kernel and
    # passed in, rather than with the in-kernel pltpu PRNG, to keep the check
    # deterministic against the plain-JAX reference.

    # ---- case 1: small batch, f32 matmuls, single grid step ----
    x = jax.random.normal(k_x, (batch, input_dim), jnp.float32)
    eps = jax.random.normal(k_eps, (batch, latent_dim), jnp.float32)
    recon, mu, log_var = vae_forward(x, eps, params)
    jax.block_until_ready((recon, mu, log_var))
    r_ref, mu_ref, lv_ref = vae_forward_ref(x, eps, params)
    assert jnp.allclose(recon, r_ref, atol=1e-5, rtol=1e-5)
    assert jnp.allclose(mu, mu_ref, atol=1e-5, rtol=1e-5)
    assert jnp.allclose(log_var, lv_ref, atol=1e-5, rtol=1e-5)

    # ---- case 2: multi-step batch grid with padding (B=20, TB=16 -> 2 steps) ----
    B2 = 20
    x2 = jax.random.normal(k_x2, (B2, input_dim), jnp.float32)
    eps2 = jax.random.normal(k_eps2, (B2, latent_dim), jnp.float32)
    recon2, mu2, lv2 = vae_forward(x2, eps2, params, batch_tile=16)
    jax.block_until_ready((recon2, mu2, lv2))
    r2, m2, l2 = vae_forward_ref(x2, eps2, params)
    assert jnp.allclose(recon2, r2, atol=1e-5, rtol=1e-5)
    assert jnp.allclose(mu2, m2, atol=1e-5, rtol=1e-5)
    assert jnp.allclose(lv2, l2, atol=1e-5, rtol=1e-5)

    # ---- case 3: bf16 MXU operands (v6e/v7x fast path), f32 accumulation ----
    recon3, mu3, lv3 = vae_forward(x, eps, params, matmul_dtype=jnp.bfloat16)
    jax.block_until_ready((recon3, mu3, lv3))
    assert jnp.allclose(recon3, r_ref, atol=5e-2, rtol=5e-2)
    assert jnp.allclose(mu3, mu_ref, atol=5e-2, rtol=5e-2)
    assert jnp.allclose(lv3, lv_ref, atol=5e-2, rtol=5e-2)

    print("KERNEL_OK")
</pallas_src>

<mosaic_0001>
module attributes {stable_mosaic.version = 11 : i64} {
  func.func @_vae_kernel(%arg0: i32, %arg1: memref<8x128xf32, #tpu.memory_space<vmem>>, %arg2: memref<8x16xf32, #tpu.memory_space<vmem>>, %arg3: memref<128x64xf32, #tpu.memory_space<vmem>>, %arg4: memref<1x64xf32, #tpu.memory_space<vmem>>, %arg5: memref<64x32xf32, #tpu.memory_space<vmem>>, %arg6: memref<1x32xf32, #tpu.memory_space<vmem>>, %arg7: memref<32x32xf32, #tpu.memory_space<vmem>>, %arg8: memref<1x32xf32, #tpu.memory_space<vmem>>, %arg9: memref<16x32xf32, #tpu.memory_space<vmem>>, %arg10: memref<1x32xf32, #tpu.memory_space<vmem>>, %arg11: memref<32x64xf32, #tpu.memory_space<vmem>>, %arg12: memref<1x64xf32, #tpu.memory_space<vmem>>, %arg13: memref<64x128xf32, #tpu.memory_space<vmem>>, %arg14: memref<1x128xf32, #tpu.memory_space<vmem>>, %arg15: memref<8x128xf32, #tpu.memory_space<vmem>>, %arg16: memref<8x32xf32, #tpu.memory_space<vmem>>) attributes {dimension_semantics = [#tpu.dimension_semantics<parallel>], iteration_bounds = array<i64: 1>, scalar_prefetch = 0 : i64, scratch_operands = 0 : i64, tpu.core_type = #tpu.core_type<tc>, window_params = [{transform_indices = @transform_0, window_bounds = array<i64: 8, 128>}, {transform_indices = @transform_1, window_bounds = array<i64: 8, 16>}, {pipeline_mode = #tpu.pipeline_mode<synchronous>, transform_indices = @transform_2, window_bounds = array<i64: 128, 64>}, {pipeline_mode = #tpu.pipeline_mode<synchronous>, transform_indices = @transform_3, window_bounds = array<i64: 1, 64>}, {pipeline_mode = #tpu.pipeline_mode<synchronous>, transform_indices = @transform_4, window_bounds = array<i64: 64, 32>}, {pipeline_mode = #tpu.pipeline_mode<synchronous>, transform_indices = @transform_5, window_bounds = array<i64: 1, 32>}, {pipeline_mode = #tpu.pipeline_mode<synchronous>, transform_indices = @transform_6, window_bounds = array<i64: 32, 32>}, {pipeline_mode = #tpu.pipeline_mode<synchronous>, transform_indices = @transform_7, window_bounds = array<i64: 1, 32>}, {pipeline_mode = #tpu.pipeline_mode<synchronous>, transform_indices = @transform_8, window_bounds = array<i64: 16, 32>}, {pipeline_mode = #tpu.pipeline_mode<synchronous>, transform_indices = @transform_9, window_bounds = array<i64: 1, 32>}, {pipeline_mode = #tpu.pipeline_mode<synchronous>, transform_indices = @transform_10, window_bounds = array<i64: 32, 64>}, {pipeline_mode = #tpu.pipeline_mode<synchronous>, transform_indices = @transform_11, window_bounds = array<i64: 1, 64>}, {pipeline_mode = #tpu.pipeline_mode<synchronous>, transform_indices = @transform_12, window_bounds = array<i64: 64, 128>}, {pipeline_mode = #tpu.pipeline_mode<synchronous>, transform_indices = @transform_13, window_bounds = array<i64: 1, 128>}, {transform_indices = @transform_14, window_bounds = array<i64: 8, 128>}, {transform_indices = @transform_15, window_bounds = array<i64: 8, 32>}]} {
    %c0 = arith.constant 0 : index
    %c0_0 = arith.constant 0 : index
    %0 = vector.load %arg1[%c0, %c0_0] : memref<8x128xf32, #tpu.memory_space<vmem>>, vector<8x128xf32>
    %c0_1 = arith.constant 0 : index
    %c0_2 = arith.constant 0 : index
    %1 = vector.load %arg2[%c0_1, %c0_2] : memref<8x16xf32, #tpu.memory_space<vmem>>, vector<8x16xf32>
    %c0_3 = arith.constant 0 : index
    %c0_4 = arith.constant 0 : index
    %2 = vector.load %arg3[%c0_3, %c0_4] : memref<128x64xf32, #tpu.memory_space<vmem>>, vector<128x64xf32>
    %cst = arith.constant dense<0.000000e+00> : vector<8x64xf32>
    %3 = tpu.matmul %0, %2, %cst {dimension_numbers = #tpu.dot_dimension_numbers<[1], [0], [0], [1], [0, 0, 1, 1], [], []>} : vector<8x128xf32>, vector<128x64xf32>, vector<8x64xf32> -> vector<8x64xf32>
    %c0_5 = arith.constant 0 : index
    %c0_6 = arith.constant 0 : index
    %4 = vector.load %arg4[%c0_5, %c0_6] : memref<1x64xf32, #tpu.memory_space<vmem>>, vector<1x64xf32>
    %5 = vector.broadcast %4 : vector<1x64xf32> to vector<8x64xf32>
    %6 = arith.addf %3, %5 : vector<8x64xf32>
    %cst_7 = arith.constant 0.000000e+00 : f32
    %7 = vector.broadcast %cst_7 : f32 to vector<8x64xf32>
    %8 = arith.maximumf %6, %7 : vector<8x64xf32>
    %c0_8 = arith.constant 0 : index
    %c0_9 = arith.constant 0 : index
    %9 = vector.load %arg5[%c0_8, %c0_9] : memref<64x32xf32, #tpu.memory_space<vmem>>, vector<64x32xf32>
    %cst_10 = arith.constant dense<0.000000e+00> : vector<8x32xf32>
    %10 = tpu.matmul %8, %9, %cst_10 {dimension_numbers = #tpu.dot_dimension_numbers<[1], [0], [0], [1], [0, 0, 1, 1], [], []>} : vector<8x64xf32>, vector<64x32xf32>, vector<8x32xf32> -> vector<8x32xf32>
    %c0_11 = arith.constant 0 : index
    %c0_12 = arith.constant 0 : index
    %11 = vector.load %arg6[%c0_11, %c0_12] : memref<1x32xf32, #tpu.memory_space<vmem>>, vector<1x32xf32>
    %12 = vector.broadcast %11 : vector<1x32xf32> to vector<8x32xf32>
    %13 = arith.addf %10, %12 : vector<8x32xf32>
    %cst_13 = arith.constant 0.000000e+00 : f32
    %14 = vector.broadcast %cst_13 : f32 to vector<8x32xf32>
    %15 = arith.maximumf %13, %14 : vector<8x32xf32>
    %c0_14 = arith.constant 0 : index
    %c0_15 = arith.constant 0 : index
    %16 = vector.load %arg7[%c0_14, %c0_15] : memref<32x32xf32, #tpu.memory_space<vmem>>, vector<32x32xf32>
    %cst_16 = arith.constant dense<0.000000e+00> : vector<8x32xf32>
    %17 = tpu.matmul %15, %16, %cst_16 {dimension_numbers = #tpu.dot_dimension_numbers<[1], [0], [0], [1], [0, 0, 1, 1], [], []>} : vector<8x32xf32>, vector<32x32xf32>, vector<8x32xf32> -> vector<8x32xf32>
    %c0_17 = arith.constant 0 : index
    %c0_18 = arith.constant 0 : index
    %18 = vector.load %arg8[%c0_17, %c0_18] : memref<1x32xf32, #tpu.memory_space<vmem>>, vector<1x32xf32>
    %19 = vector.broadcast %18 : vector<1x32xf32> to vector<8x32xf32>
    %20 = arith.addf %17, %19 : vector<8x32xf32>
    %21 = vector.extract_strided_slice %20 {offsets = [0, 0], sizes = [8, 16], strides = [1, 1]} : vector<8x32xf32> to vector<8x16xf32>
    %22 = vector.extract_strided_slice %20 {offsets = [0, 16], sizes = [8, 16], strides = [1, 1]} : vector<8x32xf32> to vector<8x16xf32>
    %cst_19 = arith.constant 5.000000e-01 : f32
    %23 = vector.broadcast %cst_19 : f32 to vector<8x16xf32>
    %24 = arith.mulf %23, %22 : vector<8x16xf32>
    %25 = math.exp %24 : vector<8x16xf32>
    %26 = arith.mulf %1, %25 : vector<8x16xf32>
    %27 = arith.addf %21, %26 : vector<8x16xf32>
    %c0_20 = arith.constant 0 : index
    %c0_21 = arith.constant 0 : index
    %28 = vector.load %arg9[%c0_20, %c0_21] : memref<16x32xf32, #tpu.memory_space<vmem>>, vector<16x32xf32>
    %cst_22 = arith.constant dense<0.000000e+00> : vector<8x32xf32>
    %29 = tpu.matmul %27, %28, %cst_22 {dimension_numbers = #tpu.dot_dimension_numbers<[1], [0], [0], [1], [0, 0, 1, 1], [], []>} : vector<8x16xf32>, vector<16x32xf32>, vector<8x32xf32> -> vector<8x32xf32>
    %c0_23 = arith.constant 0 : index
    %c0_24 = arith.constant 0 : index
    %30 = vector.load %arg10[%c0_23, %c0_24] : memref<1x32xf32, #tpu.memory_space<vmem>>, vector<1x32xf32>
    %31 = vector.broadcast %30 : vector<1x32xf32> to vector<8x32xf32>
    %32 = arith.addf %29, %31 : vector<8x32xf32>
    %cst_25 = arith.constant 0.000000e+00 : f32
    %33 = vector.broadcast %cst_25 : f32 to vector<8x32xf32>
    %34 = arith.maximumf %32, %33 : vector<8x32xf32>
    %c0_26 = arith.constant 0 : index
    %c0_27 = arith.constant 0 : index
    %35 = vector.load %arg11[%c0_26, %c0_27] : memref<32x64xf32, #tpu.memory_space<vmem>>, vector<32x64xf32>
    %cst_28 = arith.constant dense<0.000000e+00> : vector<8x64xf32>
    %36 = tpu.matmul %34, %35, %cst_28 {dimension_numbers = #tpu.dot_dimension_numbers<[1], [0], [0], [1], [0, 0, 1, 1], [], []>} : vector<8x32xf32>, vector<32x64xf32>, vector<8x64xf32> -> vector<8x64xf32>
    %c0_29 = arith.constant 0 : index
    %c0_30 = arith.constant 0 : index
    %37 = vector.load %arg12[%c0_29, %c0_30] : memref<1x64xf32, #tpu.memory_space<vmem>>, vector<1x64xf32>
    %38 = vector.broadcast %37 : vector<1x64xf32> to vector<8x64xf32>
    %39 = arith.addf %36, %38 : vector<8x64xf32>
    %cst_31 = arith.constant 0.000000e+00 : f32
    %40 = vector.broadcast %cst_31 : f32 to vector<8x64xf32>
    %41 = arith.maximumf %39, %40 : vector<8x64xf32>
    %c0_32 = arith.constant 0 : index
    %c0_33 = arith.constant 0 : index
    %42 = vector.load %arg13[%c0_32, %c0_33] : memref<64x128xf32, #tpu.memory_space<vmem>>, vector<64x128xf32>
    %cst_34 = arith.constant dense<0.000000e+00> : vector<8x128xf32>
    %43 = tpu.matmul %41, %42, %cst_34 {dimension_numbers = #tpu.dot_dimension_numbers<[1], [0], [0], [1], [0, 0, 1, 1], [], []>} : vector<8x64xf32>, vector<64x128xf32>, vector<8x128xf32> -> vector<8x128xf32>
    %c0_35 = arith.constant 0 : index
    %c0_36 = arith.constant 0 : index
    %44 = vector.load %arg14[%c0_35, %c0_36] : memref<1x128xf32, #tpu.memory_space<vmem>>, vector<1x128xf32>
    %45 = vector.broadcast %44 : vector<1x128xf32> to vector<8x128xf32>
    %46 = arith.addf %43, %45 : vector<8x128xf32>
    %47 = arith.negf %46 : vector<8x128xf32>
    %48 = math.exp %47 : vector<8x128xf32>
    %cst_37 = arith.constant 1.000000e+00 : f32
    %49 = vector.broadcast %cst_37 : f32 to vector<8x128xf32>
    %50 = arith.addf %49, %48 : vector<8x128xf32>
    %51 = arith.divf %49, %50 : vector<8x128xf32>
    %c0_38 = arith.constant 0 : index
    %c0_39 = arith.constant 0 : index
    %52 = vector.load %arg15[%c0_38, %c0_39] : memref<8x128xf32, #tpu.memory_space<vmem>>, vector<8x128xf32>
    tpu.vector_store %arg15[%c0_38, %c0_39], %51 {strides = array<i32>} : memref<8x128xf32, #tpu.memory_space<vmem>>, vector<8x128xf32>,
    %c0_40 = arith.constant 0 : index
    %c0_41 = arith.constant 0 : index
    %53 = vector.load %arg16[%c0_40, %c0_41] : memref<8x32xf32, #tpu.memory_space<vmem>>, vector<8x32xf32>
    tpu.vector_store %arg16[%c0_40, %c0_41], %20 {strides = array<i32>} : memref<8x32xf32, #tpu.memory_space<vmem>>, vector<8x32xf32>,
    return
  }
  func.func @transform_0(%arg0: i32) -> (i32, i32) {
    %c0_i32 = arith.constant 0 : i32
    %c0_i32_0 = arith.constant 0 : i32
    return %arg0, %c0_i32 : i32, i32
  }
  func.func @transform_1(%arg0: i32) -> (i32, i32) {
    %c0_i32 = arith.constant 0 : i32
    %c0_i32_0 = arith.constant 0 : i32
    return %arg0, %c0_i32 : i32, i32
  }
  func.func @transform_2(%arg0: i32) -> (i32, i32) {
    %c0_i32 = arith.constant 0 : i32
    %c0_i32_0 = arith.constant 0 : i32
    %c0_i32_1 = arith.constant 0 : i32
    return %c0_i32, %c0_i32_0 : i32, i32
  }
  func.func @transform_3(%arg0: i32) -> (i32, i32) {
    %c0_i32 = arith.constant 0 : i32
    %c0_i32_0 = arith.constant 0 : i32
    %c0_i32_1 = arith.constant 0 : i32
    return %c0_i32, %c0_i32_0 : i32, i32
  }
  func.func @transform_4(%arg0: i32) -> (i32, i32) {
    %c0_i32 = arith.constant 0 : i32
    %c0_i32_0 = arith.constant 0 : i32
    %c0_i32_1 = arith.constant 0 : i32
    return %c0_i32, %c0_i32_0 : i32, i32
  }
  func.func @transform_5(%arg0: i32) -> (i32, i32) {
    %c0_i32 = arith.constant 0 : i32
    %c0_i32_0 = arith.constant 0 : i32
    %c0_i32_1 = arith.constant 0 : i32
    return %c0_i32, %c0_i32_0 : i32, i32
  }
  func.func @transform_6(%arg0: i32) -> (i32, i32) {
    %c0_i32 = arith.constant 0 : i32
    %c0_i32_0 = arith.constant 0 : i32
    %c0_i32_1 = arith.constant 0 : i32
    return %c0_i32, %c0_i32_0 : i32, i32
  }
  func.func @transform_7(%arg0: i32) -> (i32, i32) {
    %c0_i32 = arith.constant 0 : i32
    %c0_i32_0 = arith.constant 0 : i32
    %c0_i32_1 = arith.constant 0 : i32
    return %c0_i32, %c0_i32_0 : i32, i32
  }
  func.func @transform_8(%arg0: i32) -> (i32, i32) {
    %c0_i32 = arith.constant 0 : i32
    %c0_i32_0 = arith.constant 0 : i32
    %c0_i32_1 = arith.constant 0 : i32
    return %c0_i32, %c0_i32_0 : i32, i32
  }
  func.func @transform_9(%arg0: i32) -> (i32, i32) {
    %c0_i32 = arith.constant 0 : i32
    %c0_i32_0 = arith.constant 0 : i32
    %c0_i32_1 = arith.constant 0 : i32
    return %c0_i32, %c0_i32_0 : i32, i32
  }
  func.func @transform_10(%arg0: i32) -> (i32, i32) {
    %c0_i32 = arith.constant 0 : i32
    %c0_i32_0 = arith.constant 0 : i32
    %c0_i32_1 = arith.constant 0 : i32
    return %c0_i32, %c0_i32_0 : i32, i32
  }
  func.func @transform_11(%arg0: i32) -> (i32, i32) {
    %c0_i32 = arith.constant 0 : i32
    %c0_i32_0 = arith.constant 0 : i32
    %c0_i32_1 = arith.constant 0 : i32
    return %c0_i32, %c0_i32_0 : i32, i32
  }
  func.func @transform_12(%arg0: i32) -> (i32, i32) {
    %c0_i32 = arith.constant 0 : i32
    %c0_i32_0 = arith.constant 0 : i32
    %c0_i32_1 = arith.constant 0 : i32
    return %c0_i32, %c0_i32_0 : i32, i32
  }
  func.func @transform_13(%arg0: i32) -> (i32, i32) {
    %c0_i32 = arith.constant 0 : i32
    %c0_i32_0 = arith.constant 0 : i32
    %c0_i32_1 = arith.constant 0 : i32
    return %c0_i32, %c0_i32_0 : i32, i32
  }
  func.func @transform_14(%arg0: i32) -> (i32, i32) {
    %c0_i32 = arith.constant 0 : i32
    %c0_i32_0 = arith.constant 0 : i32
    return %arg0, %c0_i32 : i32, i32
  }
  func.func @transform_15(%arg0: i32) -> (i32, i32) {
    %c0_i32 = arith.constant 0 : i32
    %c0_i32_0 = arith.constant 0 : i32
    return %arg0, %c0_i32 : i32, i32
  }
}

</mosaic_0001>

<llo_original>
// kernel: tpu_custom_call.1
$region0: #{tpu_custom_call.1}
  #allocation0 [shape = 'u32[]', space=smem, size = 0x4, offset = 0x4, fixed_abs, tag = 'smem constant byte address 0x4 - core index']
  #allocation1 [shape = 'u32[144,128]{1,0:T(1,128)}', space=vmem, size = 0x12000, scoped, tag = 'internal scratch']
  %s0 = inlined_call_operand.vmem [shape: f32[8,128], index: 0, kind: input, shape index: {}]
  %s1 = inlined_call_operand.vmem [shape: f32[8,16], index: 1, kind: input, shape index: {}]
  %s2 = inlined_call_operand.vmem [shape: f32[128,64], index: 2, kind: input, shape index: {}]
  %s3 = inlined_call_operand.vmem [shape: f32[1,64], index: 3, kind: input, shape index: {}]
  %s4 = inlined_call_operand.vmem [shape: f32[64,32], index: 4, kind: input, shape index: {}]
  %s5 = inlined_call_operand.vmem [shape: f32[1,32], index: 5, kind: input, shape index: {}]
  %s6 = inlined_call_operand.vmem [shape: f32[32,32], index: 6, kind: input, shape index: {}]
  %s7 = inlined_call_operand.vmem [shape: f32[1,32], index: 7, kind: input, shape index: {}]
  %s8 = inlined_call_operand.vmem [shape: f32[16,32], index: 8, kind: input, shape index: {}]
  %s9 = inlined_call_operand.vmem [shape: f32[1,32], index: 9, kind: input, shape index: {}]
  %s10 = inlined_call_operand.vmem [shape: f32[32,64], index: 10, kind: input, shape index: {}]
  %s11 = inlined_call_operand.vmem [shape: f32[1,64], index: 11, kind: input, shape index: {}]
  %s12 = inlined_call_operand.vmem [shape: f32[64,128], index: 12, kind: input, shape index: {}]
  %s13 = inlined_call_operand.vmem [shape: f32[1,128], index: 13, kind: input, shape index: {}]
  %s14 = inlined_call_operand.hbm [shape: f32[8,128], index: 14, kind: output, shape index: {0}]
  %s15 = inlined_call_operand.hbm [shape: f32[8,32], index: 15, kind: output, shape index: {1}]
  %16 = xla_tuple %s14, %s15
  %s17 = sld [smem:[#allocation0]]
  $region74: #{tpu_custom_call.1} parent=0
    _
  %s19 = ssub.s32 1, %s17
  %s20 = scalar_select 0, %s19, %s17
  $region1: #{tpu_custom_call.1} parent=0
    #allocation2 [shape = 'u8[4096]{0}', space=vmem, size = 0x1000, scoped, tag = 'output window, operand 0, single buffered']
    #allocation3 [shape = 's32[1]{0}', space=sflag, size = 0x4, scoped, tag = 'scoped memory for tpu_custom_call.1']
    #allocation4 [shape = 'u8[4096]{0}', space=vmem, size = 0x1000, scoped, tag = 'output window, operand 1, single buffered']
    #allocation5 [shape = 's32[1]{0}', space=sflag, size = 0x4, scoped, tag = 'scoped memory for tpu_custom_call.1']
    %21 = vsyncpa [#allocation3], 0
    %22 = vsyncpa [#allocation5], 0
    // Predicated region
    $region2: #{tpu_custom_call.1} parent=1 // pred_check
      _
    $region3: #{tpu_custom_call.1} parent=1 // pred_check_branch
      %24 = sbr.rel (0) target = $region5
    $region4: #{tpu_custom_call.1} parent=1 // pred_region
      _
    $region5: #{tpu_custom_call.1} parent=1 // pred_fallthru
      _
    // Predicated region
    $region6: #{tpu_custom_call.1} parent=1 // pred_check
      _
    $region7: #{tpu_custom_call.1} parent=1 // pred_check_branch
      %26 = sbr.rel (0) target = $region9
    $region8: #{tpu_custom_call.1} parent=1 // pred_region
      _
    $region9: #{tpu_custom_call.1} parent=1 // pred_fallthru
      _
    // Predicated region
    $region10: #{tpu_custom_call.1} parent=1 // pred_check
      _
    $region11: #{tpu_custom_call.1} parent=1 // pred_check_branch
      %28 = sbr.rel (0) target = $region13
    $region12: #{tpu_custom_call.1} parent=1 // pred_region
      _
    $region13: #{tpu_custom_call.1} parent=1 // pred_fallthru
      _
    // Predicated region
    $region14: #{tpu_custom_call.1} parent=1 // pred_check
      _
    $region15: #{tpu_custom_call.1} parent=1 // pred_check_branch
      %30 = sbr.rel (0) target = $region17
    $region16: #{tpu_custom_call.1} parent=1 // pred_region
      _
    $region17: #{tpu_custom_call.1} parent=1 // pred_fallthru
      _
    // Predicated region
    $region18: #{tpu_custom_call.1} parent=1 // pred_check
      _
    $region19: #{tpu_custom_call.1} parent=1 // pred_check_branch
      %32 = sbr.rel (0) target = $region21
    $region20: #{tpu_custom_call.1} parent=1 // pred_region
      _
    $region21: #{tpu_custom_call.1} parent=1 // pred_fallthru
      _
    // Predicated region
    $region22: #{tpu_custom_call.1} parent=1 // pred_check
      _
    $region23: #{tpu_custom_call.1} parent=1 // pred_check_branch
      %34 = sbr.rel (0) target = $region25
    $region24: #{tpu_custom_call.1} parent=1 // pred_region
      _
    $region25: #{tpu_custom_call.1} parent=1 // pred_fallthru
      _
    // Predicated region
    $region26: #{tpu_custom_call.1} parent=1 // pred_check
      _
    $region27: #{tpu_custom_call.1} parent=1 // pred_check_branch
      %36 = sbr.rel (0) target = $region29
    $region28: #{tpu_custom_call.1} parent=1 // pred_region
      _
    $region29: #{tpu_custom_call.1} parent=1 // pred_fallthru
      _
    // Predicated region
    $region30: #{tpu_custom_call.1} parent=1 // pred_check
      _
    $region31: #{tpu_custom_call.1} parent=1 // pred_check_branch
      %38 = sbr.rel (0) target = $region33
    $region32: #{tpu_custom_call.1} parent=1 // pred_region
      _
    $region33: #{tpu_custom_call.1} parent=1 // pred_fallthru
      _
    // Predicated region
    $region34: #{tpu_custom_call.1} parent=1 // pred_check
      _
    $region35: #{tpu_custom_call.1} parent=1 // pred_check_branch
      %40 = sbr.rel (0) target = $region37
    $region36: #{tpu_custom_call.1} parent=1 // pred_region
      _
    $region37: #{tpu_custom_call.1} parent=1 // pred_fallthru
      _
    // Predicated region
    $region38: #{tpu_custom_call.1} parent=1 // pred_check
      _
    $region39: #{tpu_custom_call.1} parent=1 // pred_check_branch
      %42 = sbr.rel (0) target = $region41
    $region40: #{tpu_custom_call.1} parent=1 // pred_region
      _
    $region41: #{tpu_custom_call.1} parent=1 // pred_fallthru
      _
    // Predicated region
    $region42: #{tpu_custom_call.1} parent=1 // pred_check
      _
    $region43: #{tpu_custom_call.1} parent=1 // pred_check_branch
      %44 = sbr.rel (0) target = $region45
    $region44: #{tpu_custom_call.1} parent=1 // pred_region
      _
    $region45: #{tpu_custom_call.1} parent=1 // pred_fallthru
      _
    // Predicated region
    $region46: #{tpu_custom_call.1} parent=1 // pred_check
      _
    $region47: #{tpu_custom_call.1} parent=1 // pred_check_branch
      %46 = sbr.rel (0) target = $region49
    $region48: #{tpu_custom_call.1} parent=1 // pred_region
      _
    $region49: #{tpu_custom_call.1} parent=1 // pred_fallthru
      _
    // Predicated region
    $region50: #{tpu_custom_call.1} parent=1 // pred_check
      _
    $region51: #{tpu_custom_call.1} parent=1 // pred_check_branch
      %48 = sbr.rel (0) target = $region53
    $region52: #{tpu_custom_call.1} parent=1 // pred_region
      _
    $region53: #{tpu_custom_call.1} parent=1 // pred_fallthru
      _
    // Predicated region
    $region54: #{tpu_custom_call.1} parent=1 // pred_check
      _
    $region55: #{tpu_custom_call.1} parent=1 // pred_check_branch
      %50 = sbr.rel (0) target = $region57
    $region56: #{tpu_custom_call.1} parent=1 // pred_region
      _
    $region57: #{tpu_custom_call.1} parent=1 // pred_fallthru
      _
    %v51 = vld [vmem:[%s0] sm:$0xff]
    %v52 = vld [vmem:[%s1] sm:$0xff]
    %v53 = vld [vmem:[%s2] sm:$0xff]
    %v54 = vld [vmem:[%s2 + $0x8] sm:$0xff]
    %v55 = vld [vmem:[%s2 + $0x10] sm:$0xff]
    %v56 = vld [vmem:[%s2 + $0x18] sm:$0xff]
    %v57 = vld [vmem:[%s2 + $0x20] sm:$0xff]
    %v58 = vld [vmem:[%s2 + $0x28] sm:$0xff]
    %v59 = vld [vmem:[%s2 + $0x30] sm:$0xff]
    %v60 = vld [vmem:[%s2 + $0x38] sm:$0xff]
    %v61 = vld [vmem:[%s2 + $0x40] sm:$0xff]
    %v62 = vld [vmem:[%s2 + $0x48] sm:$0xff]
    %v63 = vld [vmem:[%s2 + $0x50] sm:$0xff]
    %v64 = vld [vmem:[%s2 + $0x58] sm:$0xff]
    %v65 = vld [vmem:[%s2 + $0x60] sm:$0xff]
    %v66 = vld [vmem:[%s2 + $0x68] sm:$0xff]
    %v67 = vld [vmem:[%s2 + $0x70] sm:$0xff]
    %v68 = vld [vmem:[%s2 + $0x78] sm:$0xff]
    %v69 = vld [vmem:[%s3] sm:$0x1]
    %v71 = vlaneseq
    %v72 = vshrl.u32 %v71, 7
    %v73 = vsub.s32 0, %v72
    %v74 = vrot.slane %v69, %v73
    %76 = vmatprep.subr.mxu0 0.0
    %77 = vmatpush1.msra.mxu0 %v53
    %78 = vmatprep.subr.mxu0 0.0
    %79 = vmatpush1.msra.mxu0 %v54
    %80 = vmatprep.subr.mxu0 0.0
    %81 = vmatpush1.msra.mxu0 %v55
    %82 = vmatprep.subr.mxu0 0.0
    %83 = vmatpush1.msra.mxu0 %v56
    %84 = vmatprep.subr.mxu0 0.0
    %85 = vmatpush1.msra.mxu0 %v57
    %86 = vmatprep.subr.mxu0 0.0
    %87 = vmatpush1.msra.mxu0 %v58
    %88 = vmatprep.subr.mxu0 0.0
    %89 = vmatpush1.msra.mxu0 %v59
    %90 = vmatprep.subr.mxu0 0.0
    %91 = vmatpush1.msra.mxu0 %v60
    %92 = vmatprep.subr.mxu0 0.0
    %93 = vmatpush1.msra.mxu0 %v61
    %94 = vmatprep.subr.mxu0 0.0
    %95 = vmatpush1.msra.mxu0 %v62
    %96 = vmatprep.subr.mxu0 0.0
    %97 = vmatpush1.msra.mxu0 %v63
    %98 = vmatprep.subr.mxu0 0.0
    %99 = vmatpush1.msra.mxu0 %v64
    %100 = vmatprep.subr.mxu0 0.0
    %101 = vmatpush1.msra.mxu0 %v65
    %102 = vmatprep.subr.mxu0 0.0
    %103 = vmatpush1.msra.mxu0 %v66
    %104 = vmatprep.subr.mxu0 0.0
    %105 = vmatpush1.msra.mxu0 %v67
    %106 = vmatprep.subr.mxu0 0.0
    %107 = vmatpush1.msra.mxu0 %v68
    %108 = vmatprep.subr.mxu0 0.0
    %109 = vmatpush1.msra.mxu0 0.0
    %110 = vmatprep.subr.mxu0 0.0
    %111 = vmatpush1.msra.mxu0 0.0
    %112 = vmatprep.subr.mxu0 0.0
    %113 = vmatpush1.msra.mxu0 0.0
    %114 = vmatprep.subr.mxu0 0.0
    %115 = vmatpush1.msra.mxu0 0.0
    %116 = vmatprep.subr.mxu0 0.0
    %117 = vmatpush1.msra.mxu0 0.0
    %118 = vmatprep.subr.mxu0 0.0
    %119 = vmatpush1.msra.mxu0 0.0
    %120 = vmatprep.subr.mxu0 0.0
    %121 = vmatpush1.msra.mxu0 0.0
    %122 = vmatprep.subr.mxu0 0.0
    %123 = vmatpush1.msra.mxu0 0.0
    %124 = vmatprep.subr.mxu0 0.0
    %125 = vmatpush1.msra.mxu0 0.0
    %126 = vmatprep.subr.mxu0 0.0
    %127 = vmatpush1.msra.mxu0 0.0
    %128 = vmatprep.subr.mxu0 0.0
    %129 = vmatpush1.msra.mxu0 0.0
    %130 = vmatprep.subr.mxu0 0.0
    %131 = vmatpush1.msra.mxu0 0.0
    %132 = vmatprep.subr.mxu0 0.0
    %133 = vmatpush1.msra.mxu0 0.0
    %134 = vmatprep.subr.mxu0 0.0
    %135 = vmatpush1.msra.mxu0 0.0
    %136 = vmatprep.subr.mxu0 0.0
    %137 = vmatpush1.msra.mxu0 0.0
    %138 = vmatprep.subr.mxu0 0.0
    %139 = vmatpush1.msra.mxu0 0.0
    %140 = vmatprep.mubr.f32.mxu0 0.0
    %141 = vmatmul.mubr.f32.gmra.mrb[0].mxu0 %v51
    %v142 = vpop.f32.mrb[0].mxu0
    %v143 = vadd.f32 %v74, %v142
    %v144 = vpop.f32.mrb[0].mxu0
    %145 = vdwg.mxu0
    %v146 = vmax.f32 %v143, 0.0
    %v147 = vld [vmem:[%s4] sm:$0xff]
    %v148 = vld [vmem:[%s4 + $0x8] sm:$0xff]
    %v149 = vld [vmem:[%s4 + $0x10] sm:$0xff]
    %v150 = vld [vmem:[%s4 + $0x18] sm:$0xff]
    %v151 = vld [vmem:[%s4 + $0x20] sm:$0xff]
    %v152 = vld [vmem:[%s4 + $0x28] sm:$0xff]
    %v153 = vld [vmem:[%s4 + $0x30] sm:$0xff]
    %v154 = vld [vmem:[%s4 + $0x38] sm:$0xff]
    %v155 = vld [vmem:[%s5] sm:$0x1]
    %v157 = vlaneseq
    %v158 = vshrl.u32 %v157, 7
    %v159 = vsub.s32 0, %v158
    %v160 = vrot.slane %v155, %v159
    %vm162 = vcmask 523264
    %v164 = vsel %vm162, %v146, 0
    %166 = vmatprep.subr.mxu0 0.0
    %167 = vmatpush1.msra.mxu0 %v147
    %168 = vmatprep.subr.mxu0 0.0
    %169 = vmatpush1.msra.mxu0 %v148
    %170 = vmatprep.subr.mxu0 0.0
    %171 = vmatpush1.msra.mxu0 %v149
    %172 = vmatprep.subr.mxu0 0.0
    %173 = vmatpush1.msra.mxu0 %v150
    %174 = vmatprep.subr.mxu0 0.0
    %175 = vmatpush1.msra.mxu0 %v151
    %176 = vmatprep.subr.mxu0 0.0
    %177 = vmatpush1.msra.mxu0 %v152
    %178 = vmatprep.subr.mxu0 0.0
    %179 = vmatpush1.msra.mxu0 %v153
    %180 = vmatprep.subr.mxu0 0.0
    %181 = vmatpush1.msra.mxu0 %v154
    %182 = vmatprep.subr.mxu0 0.0
    %183 = vmatpush1.msra.mxu0 0.0
    %184 = vmatprep.subr.mxu0 0.0
    %185 = vmatpush1.msra.mxu0 0.0
    %186 = vmatprep.subr.mxu0 0.0
    %187 = vmatpush1.msra.mxu0 0.0
    %188 = vmatprep.subr.mxu0 0.0
    %189 = vmatpush1.msra.mxu0 0.0
    %190 = vmatprep.subr.mxu0 0.0
    %191 = vmatpush1.msra.mxu0 0.0
    %192 = vmatprep.subr.mxu0 0.0
    %193 = vmatpush1.msra.mxu0 0.0
    %194 = vmatprep.subr.mxu0 0.0
    %195 = vmatpush1.msra.mxu0 0.0
    %196 = vmatprep.subr.mxu0 0.0
    %197 = vmatpush1.msra.mxu0 0.0
    %198 = vmatprep.subr.mxu0 0.0
    %199 = vmatpush1.msra.mxu0 0.0
    %200 = vmatprep.subr.mxu0 0.0
    %201 = vmatpush1.msra.mxu0 0.0
    %202 = vmatprep.subr.mxu0 0.0
    %203 = vmatpush1.msra.mxu0 0.0
    %204 = vmatprep.subr.mxu0 0.0
    %205 = vmatpush1.msra.mxu0 0.0
    %206 = vmatprep.subr.mxu0 0.0
    %207 = vmatpush1.msra.mxu0 0.0
    %208 = vmatprep.subr.mxu0 0.0
    %209 = vmatpush1.msra.mxu0 0.0
    %210 = vmatprep.subr.mxu0 0.0
    %211 = vmatpush1.msra.mxu0 0.0
    %212 = vmatprep.subr.mxu0 0.0
    %213 = vmatpush1.msra.mxu0 0.0
    %214 = vmatprep.subr.mxu0 0.0
    %215 = vmatpush1.msra.mxu0 0.0
    %216 = vmatprep.subr.mxu0 0.0
    %217 = vmatpush1.msra.mxu0 0.0
    %218 = vmatprep.subr.mxu0 0.0
    %219 = vmatpush1.msra.mxu0 0.0
    %220 = vmatprep.subr.mxu0 0.0
    %221 = vmatpush1.msra.mxu0 0.0
    %222 = vmatprep.subr.mxu0 0.0
    %223 = vmatpush1.msra.mxu0 0.0
    %224 = vmatprep.subr.mxu0 0.0
    %225 = vmatpush1.msra.mxu0 0.0
    %226 = vmatprep.subr.mxu0 0.0
    %227 = vmatpush1.msra.mxu0 0.0
    %228 = vmatprep.subr.mxu0 0.0
    %229 = vmatpush1.msra.mxu0 0.0
    %230 = vmatprep.mubr.f32.mxu0 0.0
    %231 = vmatmul.mubr.f32.gmra.mrb[0].mxu0 %v164
    %v232 = vpop.f32.mrb[0].mxu0
    %v233 = vadd.f32 %v160, %v232
    %v234 = vpop.f32.mrb[0].mxu0
    %235 = vdwg.mxu0
    %v236 = vmax.f32 %v233, 0.0
    %v237 = vld [vmem:[%s6] sm:$0xff]
    %v238 = vld [vmem:[%s6 + $0x8] sm:$0xff]
    %v239 = vld [vmem:[%s6 + $0x10] sm:$0xff]
    %v240 = vld [vmem:[%s6 + $0x18] sm:$0xff]
    %v241 = vld [vmem:[%s7] sm:$0x1]
    %v243 = vlaneseq
    %v244 = vshrl.u32 %v243, 7
    %v245 = vsub.s32 0, %v244
    %v246 = vrot.slane %v241, %v245
    %vm248 = vcmask 261120
    %v250 = vsel %vm248, %v236, 0
    %252 = vmatprep.subr.mxu0 0.0
    %253 = vmatpush1.msra.mxu0 %v237
    %254 = vmatprep.subr.mxu0 0.0
    %255 = vmatpush1.msra.mxu0 %v238
    %256 = vmatprep.subr.mxu0 0.0
    %257 = vmatpush1.msra.mxu0 %v239
    %258 = vmatprep.subr.mxu0 0.0
    %259 = vmatpush1.msra.mxu0 %v240
    %260 = vmatprep.subr.mxu0 0.0
    %261 = vmatpush1.msra.mxu0 0.0
    %262 = vmatprep.subr.mxu0 0.0
    %263 = vmatpush1.msra.mxu0 0.0
    %264 = vmatprep.subr.mxu0 0.0
    %265 = vmatpush1.msra.mxu0 0.0
    %266 = vmatprep.subr.mxu0 0.0
    %267 = vmatpush1.msra.mxu0 0.0
    %268 = vmatprep.subr.mxu0 0.0
    %269 = vmatpush1.msra.mxu0 0.0
    %270 = vmatprep.subr.mxu0 0.0
    %271 = vmatpush1.msra.mxu0 0.0
    %272 = vmatprep.subr.mxu0 0.0
    %273 = vmatpush1.msra.mxu0 0.0
    %274 = vmatprep.subr.mxu0 0.0
    %275 = vmatpush1.msra.mxu0 0.0
    %276 = vmatprep.subr.mxu0 0.0
    %277 = vmatpush1.msra.mxu0 0.0
    %278 = vmatprep.subr.mxu0 0.0
    %279 = vmatpush1.msra.mxu0 0.0
    %280 = vmatprep.subr.mxu0 0.0
    %281 = vmatpush1.msra.mxu0 0.0
    %282 = vmatprep.subr.mxu0 0.0
    %283 = vmatpush1.msra.mxu0 0.0
    %284 = vmatprep.subr.mxu0 0.0
    %285 = vmatpush1.msra.mxu0 0.0
    %286 = vmatprep.subr.mxu0 0.0
    %287 = vmatpush1.msra.mxu0 0.0
    %288 = vmatprep.subr.mxu0 0.0
    %289 = vmatpush1.msra.mxu0 0.0
    %290 = vmatprep.subr.mxu0 0.0
    %291 = vmatpush1.msra.mxu0 0.0
    %292 = vmatprep.subr.mxu0 0.0
    %293 = vmatpush1.msra.mxu0 0.0
    %294 = vmatprep.subr.mxu0 0.0
    %295 = vmatpush1.msra.mxu0 0.0
    %296 = vmatprep.subr.mxu0 0.0
    %297 = vmatpush1.msra.mxu0 0.0
    %298 = vmatprep.subr.mxu0 0.0
    %299 = vmatpush1.msra.mxu0 0.0
    %300 = vmatprep.subr.mxu0 0.0
    %301 = vmatpush1.msra.mxu0 0.0
    %302 = vmatprep.subr.mxu0 0.0
    %303 = vmatpush1.msra.mxu0 0.0
    %304 = vmatprep.subr.mxu0 0.0
    %305 = vmatpush1.msra.mxu0 0.0
    %306 = vmatprep.subr.mxu0 0.0
    %307 = vmatpush1.msra.mxu0 0.0
    %308 = vmatprep.subr.mxu0 0.0
    %309 = vmatpush1.msra.mxu0 0.0
    %310 = vmatprep.subr.mxu0 0.0
    %311 = vmatpush1.msra.mxu0 0.0
    %312 = vmatprep.subr.mxu0 0.0
    %313 = vmatpush1.msra.mxu0 0.0
    %314 = vmatprep.subr.mxu0 0.0
    %315 = vmatpush1.msra.mxu0 0.0
    %316 = vmatprep.mubr.f32.mxu0 0.0
    %317 = vmatmul.mubr.f32.gmra.mrb[0].mxu0 %v250
    %v318 = vpop.f32.mrb[0].mxu0
    %v319 = vadd.f32 %v246, %v318
    %v320 = vpop.f32.mrb[0].mxu0
    %321 = vdwg.mxu0
    %v322 = vmul.f32 %v319, 0.5
    %v323 = vmul.f32 %v322, 1.442695
    %v324 = vpow.pop %v323
    %326 = vrot.lane.b32.xlu0 %v324, 112
    %v327 = vpop.permute.xlu0 %326
    %v329 = vmul.f32 %v52, %v327
    %v330 = vadd.f32 %v319, %v329
    %v331 = vld [vmem:[%s8] sm:$0xff]
    %v332 = vld [vmem:[%s8 + $0x8] sm:$0xff]
    %v333 = vld [vmem:[%s9] sm:$0x1]
    %v335 = vlaneseq
    %v336 = vshrl.u32 %v335, 7
    %v337 = vsub.s32 0, %v336
    %v338 = vrot.slane %v333, %v337
    %vm340 = vcmask 130048
    %v342 = vsel %vm340, %v330, 0
    %344 = vmatprep.subr.mxu0 0.0
    %345 = vmatpush1.msra.mxu0 %v331
    %346 = vmatprep.subr.mxu0 0.0
    %347 = vmatpush1.msra.mxu0 %v332
    %348 = vmatprep.subr.mxu0 0.0
    %349 = vmatpush1.msra.mxu0 0.0
    %350 = vmatprep.subr.mxu0 0.0
    %351 = vmatpush1.msra.mxu0 0.0
    %352 = vmatprep.subr.mxu0 0.0
    %353 = vmatpush1.msra.mxu0 0.0
    %354 = vmatprep.subr.mxu0 0.0
    %355 = vmatpush1.msra.mxu0 0.0
    %356 = vmatprep.subr.mxu0 0.0
    %357 = vmatpush1.msra.mxu0 0.0
    %358 = vmatprep.subr.mxu0 0.0
    %359 = vmatpush1.msra.mxu0 0.0
    %360 = vmatprep.subr.mxu0 0.0
    %361 = vmatpush1.msra.mxu0 0.0
    %362 = vmatprep.subr.mxu0 0.0
    %363 = vmatpush1.msra.mxu0 0.0
    %364 = vmatprep.subr.mxu0 0.0
    %365 = vmatpush1.msra.mxu0 0.0
    %366 = vmatprep.subr.mxu0 0.0
    %367 = vmatpush1.msra.mxu0 0.0
    %368 = vmatprep.subr.mxu0 0.0
    %369 = vmatpush1.msra.mxu0 0.0
    %370 = vmatprep.subr.mxu0 0.0
    %371 = vmatpush1.msra.mxu0 0.0
    %372 = vmatprep.subr.mxu0 0.0
    %373 = vmatpush1.msra.mxu0 0.0
    %374 = vmatprep.subr.mxu0 0.0
    %375 = vmatpush1.msra.mxu0 0.0
    %376 = vmatprep.subr.mxu0 0.0
    %377 = vmatpush1.msra.mxu0 0.0
    %378 = vmatprep.subr.mxu0 0.0
    %379 = vmatpush1.msra.mxu0 0.0
    %380 = vmatprep.subr.mxu0 0.0
    %381 = vmatpush1.msra.mxu0 0.0
    %382 = vmatprep.subr.mxu0 0.0
    %383 = vmatpush1.msra.mxu0 0.0
    %384 = vmatprep.subr.mxu0 0.0
    %385 = vmatpush1.msra.mxu0 0.0
    %386 = vmatprep.subr.mxu0 0.0
    %387 = vmatpush1.msra.mxu0 0.0
    %388 = vmatprep.subr.mxu0 0.0
    %389 = vmatpush1.msra.mxu0 0.0
    %390 = vmatprep.subr.mxu0 0.0
    %391 = vmatpush1.msra.mxu0 0.0
    %392 = vmatprep.subr.mxu0 0.0
    %393 = vmatpush1.msra.mxu0 0.0
    %394 = vmatprep.subr.mxu0 0.0
    %395 = vmatpush1.msra.mxu0 0.0
    %396 = vmatprep.subr.mxu0 0.0
    %397 = vmatpush1.msra.mxu0 0.0
    %398 = vmatprep.subr.mxu0 0.0
    %399 = vmatpush1.msra.mxu0 0.0
    %400 = vmatprep.subr.mxu0 0.0
    %401 = vmatpush1.msra.mxu0 0.0
    %402 = vmatprep.subr.mxu0 0.0
    %403 = vmatpush1.msra.mxu0 0.0
    %404 = vmatprep.subr.mxu0 0.0
    %405 = vmatpush1.msra.mxu0 0.0
    %406 = vmatprep.subr.mxu0 0.0
    %407 = vmatpush1.msra.mxu0 0.0
    %408 = vmatprep.mubr.f32.mxu0 0.0
    %409 = vmatmul.mubr.f32.gmra.mrb[0].mxu0 %v342
    %v410 = vpop.f32.mrb[0].mxu0
    %v411 = vadd.f32 %v338, %v410
    %v412 = vpop.f32.mrb[0].mxu0
    %413 = vdwg.mxu0
    %v414 = vmax.f32 %v411, 0.0
    %v415 = vld [vmem:[%s10] sm:$0xff]
    %v416 = vld [vmem:[%s10 + $0x8] sm:$0xff]
    %v417 = vld [vmem:[%s10 + $0x10] sm:$0xff]
    %v418 = vld [vmem:[%s10 + $0x18] sm:$0xff]
    %v419 = vld [vmem:[%s11] sm:$0x1]
    %v421 = vlaneseq
    %v422 = vshrl.u32 %v421, 7
    %v423 = vsub.s32 0, %v422
    %v424 = vrot.slane %v419, %v423
    %v427 = vsel %vm248, %v414, 0
    %429 = vmatprep.subr.mxu0 0.0
    %430 = vmatpush1.msra.mxu0 %v415
    %431 = vmatprep.subr.mxu0 0.0
    %432 = vmatpush1.msra.mxu0 %v416
    %433 = vmatprep.subr.mxu0 0.0
    %434 = vmatpush1.msra.mxu0 %v417
    %435 = vmatprep.subr.mxu0 0.0
    %436 = vmatpush1.msra.mxu0 %v418
    %437 = vmatprep.subr.mxu0 0.0
    %438 = vmatpush1.msra.mxu0 0.0
    %439 = vmatprep.subr.mxu0 0.0
    %440 = vmatpush1.msra.mxu0 0.0
    %441 = vmatprep.subr.mxu0 0.0
    %442 = vmatpush1.msra.mxu0 0.0
    %443 = vmatprep.subr.mxu0 0.0
    %444 = vmatpush1.msra.mxu0 0.0
    %445 = vmatprep.subr.mxu0 0.0
    %446 = vmatpush1.msra.mxu0 0.0
    %447 = vmatprep.subr.mxu0 0.0
    %448 = vmatpush1.msra.mxu0 0.0
    %449 = vmatprep.subr.mxu0 0.0
    %450 = vmatpush1.msra.mxu0 0.0
    %451 = vmatprep.subr.mxu0 0.0
    %452 = vmatpush1.msra.mxu0 0.0
    %453 = vmatprep.subr.mxu0 0.0
    %454 = vmatpush1.msra.mxu0 0.0
    %455 = vmatprep.subr.mxu0 0.0
    %456 = vmatpush1.msra.mxu0 0.0
    %457 = vmatprep.subr.mxu0 0.0
    %458 = vmatpush1.msra.mxu0 0.0
    %459 = vmatprep.subr.mxu0 0.0
    %460 = vmatpush1.msra.mxu0 0.0
    %461 = vmatprep.subr.mxu0 0.0
    %462 = vmatpush1.msra.mxu0 0.0
    %463 = vmatprep.subr.mxu0 0.0
    %464 = vmatpush1.msra.mxu0 0.0
    %465 = vmatprep.subr.mxu0 0.0
    %466 = vmatpush1.msra.mxu0 0.0
    %467 = vmatprep.subr.mxu0 0.0
    %468 = vmatpush1.msra.mxu0 0.0
    %469 = vmatprep.subr.mxu0 0.0
    %470 = vmatpush1.msra.mxu0 0.0
    %471 = vmatprep.subr.mxu0 0.0
    %472 = vmatpush1.msra.mxu0 0.0
    %473 = vmatprep.subr.mxu0 0.0
    %474 = vmatpush1.msra.mxu0 0.0
    %475 = vmatprep.subr.mxu0 0.0
    %476 = vmatpush1.msra.mxu0 0.0
    %477 = vmatprep.subr.mxu0 0.0
    %478 = vmatpush1.msra.mxu0 0.0
    %479 = vmatprep.subr.mxu0 0.0
    %480 = vmatpush1.msra.mxu0 0.0
    %481 = vmatprep.subr.mxu0 0.0
    %482 = vmatpush1.msra.mxu0 0.0
    %483 = vmatprep.subr.mxu0 0.0
    %484 = vmatpush1.msra.mxu0 0.0
    %485 = vmatprep.subr.mxu0 0.0
    %486 = vmatpush1.msra.mxu0 0.0
    %487 = vmatprep.subr.mxu0 0.0
    %488 = vmatpush1.msra.mxu0 0.0
    %489 = vmatprep.subr.mxu0 0.0
    %490 = vmatpush1.msra.mxu0 0.0
    %491 = vmatprep.subr.mxu0 0.0
    %492 = vmatpush1.msra.mxu0 0.0
    %493 = vmatprep.mubr.f32.mxu0 0.0
    %494 = vmatmul.mubr.f32.gmra.mrb[0].mxu0 %v427
    %v495 = vpop.f32.mrb[0].mxu0
    %v496 = vadd.f32 %v424, %v495
    %v497 = vpop.f32.mrb[0].mxu0
    %498 = vdwg.mxu0
    %v499 = vmax.f32 %v496, 0.0
    %v500 = vld [vmem:[%s12] sm:$0xff]
    %v501 = vld [vmem:[%s12 + $0x8] sm:$0xff]
    %v502 = vld [vmem:[%s12 + $0x10] sm:$0xff]
    %v503 = vld [vmem:[%s12 + $0x18] sm:$0xff]
    %v504 = vld [vmem:[%s12 + $0x20] sm:$0xff]
    %v505 = vld [vmem:[%s12 + $0x28] sm:$0xff]
    %v506 = vld [vmem:[%s12 + $0x30] sm:$0xff]
    %v507 = vld [vmem:[%s12 + $0x38] sm:$0xff]
    %v508 = vld [vmem:[%s13] sm:$0x1]
    %v510 = vlaneseq
    %v511 = vshrl.u32 %v510, 7
    %v512 = vsub.s32 0, %v511
    %v513 = vrot.slane %v508, %v512
    %v516 = vsel %vm162, %v499, 0
    %518 = vmatprep.subr.mxu0 0.0
    %519 = vmatpush1.msra.mxu0 %v500
    %520 = vmatprep.subr.mxu0 0.0
    %521 = vmatpush1.msra.mxu0 %v501
    %522 = vmatprep.subr.mxu0 0.0
    %523 = vmatpush1.msra.mxu0 %v502
    %524 = vmatprep.subr.mxu0 0.0
    %525 = vmatpush1.msra.mxu0 %v503
    %526 = vmatprep.subr.mxu0 0.0
    %527 = vmatpush1.msra.mxu0 %v504
    %528 = vmatprep.subr.mxu0 0.0
    %529 = vmatpush1.msra.mxu0 %v505
    %530 = vmatprep.subr.mxu0 0.0
    %531 = vmatpush1.msra.mxu0 %v506
    %532 = vmatprep.subr.mxu0 0.0
    %533 = vmatpush1.msra.mxu0 %v507
    %534 = vmatprep.subr.mxu0 0.0
    %535 = vmatpush1.msra.mxu0 0.0
    %536 = vmatprep.subr.mxu0 0.0
    %537 = vmatpush1.msra.mxu0 0.0
    %538 = vmatprep.subr.mxu0 0.0
    %539 = vmatpush1.msra.mxu0 0.0
    %540 = vmatprep.subr.mxu0 0.0
    %541 = vmatpush1.msra.mxu0 0.0
    %542 = vmatprep.subr.mxu0 0.0
    %543 = vmatpush1.msra.mxu0 0.0
    %544 = vmatprep.subr.mxu0 0.0
    %545 = vmatpush1.msra.mxu0 0.0
    %546 = vmatprep.subr.mxu0 0.0
    %547 = vmatpush1.msra.mxu0 0.0
    %548 = vmatprep.subr.mxu0 0.0
    %549 = vmatpush1.msra.mxu0 0.0
    %550 = vmatprep.subr.mxu0 0.0
    %551 = vmatpush1.msra.mxu0 0.0
    %552 = vmatprep.subr.mxu0 0.0
    %553 = vmatpush1.msra.mxu0 0.0
    %554 = vmatprep.subr.mxu0 0.0
    %555 = vmatpush1.msra.mxu0 0.0
    %556 = vmatprep.subr.mxu0 0.0
    %557 = vmatpush1.msra.mxu0 0.0
    %558 = vmatprep.subr.mxu0 0.0
    %559 = vmatpush1.msra.mxu0 0.0
    %560 = vmatprep.subr.mxu0 0.0
    %561 = vmatpush1.msra.mxu0 0.0
    %562 = vmatprep.subr.mxu0 0.0
    %563 = vmatpush1.msra.mxu0 0.0
    %564 = vmatprep.subr.mxu0 0.0
    %565 = vmatpush1.msra.mxu0 0.0
    %566 = vmatprep.subr.mxu0 0.0
    %567 = vmatpush1.msra.mxu0 0.0
    %568 = vmatprep.subr.mxu0 0.0
    %569 = vmatpush1.msra.mxu0 0.0
    %570 = vmatprep.subr.mxu0 0.0
    %571 = vmatpush1.msra.mxu0 0.0
    %572 = vmatprep.subr.mxu0 0.0
    %573 = vmatpush1.msra.mxu0 0.0
    %574 = vmatprep.subr.mxu0 0.0
    %575 = vmatpush1.msra.mxu0 0.0
    %576 = vmatprep.subr.mxu0 0.0
    %577 = vmatpush1.msra.mxu0 0.0
    %578 = vmatprep.subr.mxu0 0.0
    %579 = vmatpush1.msra.mxu0 0.0
    %580 = vmatprep.subr.mxu0 0.0
    %581 = vmatpush1.msra.mxu0 0.0
    %582 = vmatprep.mubr.f32.mxu0 0.0
    %583 = vmatmul.mubr.f32.gmra.mrb[0].mxu0 %v516
    %v584 = vpop.f32.mrb[0].mxu0
    %v585 = vadd.f32 %v513, %v584
    %v586 = vpop.f32.mrb[0].mxu0
    %587 = vdwg.mxu0
    %v588 = vxor.u32 %v585, 2147483648
    %v589 = vmul.f32 %v588, 1.442695
    %v590 = vpow.pop %v589
    %v591 = vadd.f32 %v590, 1.0
    %v592 = vrcp.pop %v591
    %v593 = vmul.f32 1.0, %v592
    %594 = vst [vmem:[#allocation2] sm:$0xff] %v593
    %595 = vst.msk [vmem:[#allocation4] sm:$0xff] %vm248, %v319
    // Predicated region
    $region58: #{tpu_custom_call.1} parent=1 // pred_check
      _
    $region59: #{tpu_custom_call.1} parent=1 // pred_check_branch
      %597 = sbr.rel (0) target = $region61
    $region60: #{tpu_custom_call.1} parent=1 // pred_region
      %s599 = ssub.s32 128, 128
      %600 = vsyncadd [#allocation3], %s599
      %s602 = sshll.u32 [#allocation2], 4
      %s603 = int_to_ptr.vmem [resolvable:$true] %s602
      %605 = dma.vmem_to_hbm [thread:$0]  %s603, 128, %s14, [#allocation3]
    $region61: #{tpu_custom_call.1} parent=1 // pred_fallthru
      _
    // Predicated region
    $region62: #{tpu_custom_call.1} parent=1 // pred_check
      _
    $region63: #{tpu_custom_call.1} parent=1 // pred_check_branch
      %607 = sbr.rel (0) target = $region65
    $region64: #{tpu_custom_call.1} parent=1 // pred_region
      %s609 = ssub.s32 128, 128
      %610 = vsyncadd [#allocation5], %s609
      %s612 = sshll.u32 [#allocation4], 4
      %s613 = int_to_ptr.vmem [resolvable:$true] %s612
      %615 = dma.vmem_to_hbm [thread:$0]  %s613, 128, %s15, [#allocation5]
    $region65: #{tpu_custom_call.1} parent=1 // pred_fallthru
      _
    // Predicated region
    $region66: #{tpu_custom_call.1} parent=1 // pred_check
      _
    $region67: #{tpu_custom_call.1} parent=1 // pred_check_branch
      %617 = sbr.rel (0) target = $region69
    $region68: #{tpu_custom_call.1} parent=1 // pred_region
      %618 = dma.done [#allocation3], 128
    $region69: #{tpu_custom_call.1} parent=1 // pred_fallthru
      _
    // Predicated region
    $region70: #{tpu_custom_call.1} parent=1 // pred_check
      _
    $region71: #{tpu_custom_call.1} parent=1 // pred_check_branch
      %620 = sbr.rel (0) target = $region73
    $region72: #{tpu_custom_call.1} parent=1 // pred_region
      %621 = dma.done [#allocation5], 128
    $region73: #{tpu_custom_call.1} parent=1 // pred_fallthru
      _
    %622 = vsyncpa [#allocation3], 1
    %623 = vsyncpa [#allocation5], 1

</llo_original>
